<compile_context>
chip_gen: v7x
topology: tpu7x:2x2x1
jax: 0.10.0
libtpu: 0.0.40
codegen_flags: <defaults>
</compile_context>

<pallas_src>
import functools

import jax
import jax.numpy as jnp
from jax.experimental import pallas as pl
from jax.experimental.pallas import tpu as pltpu


def _round_up(x, m):
    return ((x + m - 1) // m) * m


def _focal_pow(w, gamma):
    """(1 - pt) ** gamma; small integer gamma -> repeated VPU multiplies."""
    g = float(gamma)
    if g == int(g) and 0 <= int(g) <= 16:
        n = int(g)
        if n == 0:
            return jnp.ones_like(w)
        out = w
        for _ in range(n - 1):
            out = out * w
        return out
    # General float gamma: guard the log(0) path when pt == 1 exactly.
    return jnp.where(w > 0.0, jnp.power(jnp.maximum(w, 1e-30), g), 0.0)


def _focal_loss_kernel(x_ref, t_ref, alpha_ref, out_ref, *,
                       gamma, hw_true, tile_hw, num_classes):
    # x_ref:     (C, tile_hw)  classes on sublanes, spatial on lanes
    # t_ref:     (1, tile_hw)  int32 targets
    # alpha_ref: (C, 1)        per-class weights
    # out_ref:   (8, 128)      per-grid-step partial sum (element [0,0])
    x = x_ref[...].astype(jnp.float32)
    t = t_ref[...]

    # One-hot along the class (sublane) axis from a sublane-only iota.
    iota_c = jax.lax.broadcasted_iota(jnp.int32, (num_classes, 1), 0)
    onehot = (iota_c == t).astype(jnp.float32)                    # (C, tile)

    # log-softmax gather without materializing logp over all C rows.
    m = jnp.max(x, axis=0, keepdims=True)                         # (1, tile)
    z = x - m
    sumexp = jnp.sum(jnp.exp(z), axis=0, keepdims=True)           # (1, tile)
    logpt = jnp.sum(z * onehot, axis=0, keepdims=True) - jnp.log(sumexp)
    pt = jnp.exp(logpt)
    at = jnp.sum(alpha_ref[...].astype(jnp.float32) * onehot,
                 axis=0, keepdims=True)                           # (1, tile)

    loss = -_focal_pow(1.0 - pt, gamma) * (logpt * at)            # (1, tile)

    # Only the ragged tail needs masking; when tile divides HW this whole
    # branch is compiled out.  Mask BEFORE the sum so out-of-bounds (garbage)
    # lanes contribute exactly 0.
    if hw_true % tile_hw != 0:
        lane = jax.lax.broadcasted_iota(jnp.int32, (1, tile_hw), 1)
        valid = (pl.program_id(1) * tile_hw + lane) < hw_true
        loss = jnp.where(valid, loss, 0.0)

    # In-kernel reduction: one scalar partial sum per grid step, written into
    # a tiny lane-dense (8,128) output block (only [0,0] is non-zero).
    s = jnp.sum(loss)
    r = jax.lax.broadcasted_iota(jnp.int32, (8, 128), 0)
    c = jax.lax.broadcasted_iota(jnp.int32, (8, 128), 1)
    out_ref[...] = jnp.where(jnp.logical_and(r == 0, c == 0),
                             s, jnp.float32(0.0))


def _pick_tile(HW, C, x_itemsize, N, requested):
    """Adaptive spatial tile (multiple of 128 lanes)."""
    hw128 = _round_up(max(HW, 1), 128)
    if requested is not None:
        return max(128, min(_round_up(requested, 128), hw128))

    per_lane = C * x_itemsize + 4                       # logits + int32 target
    tile = _round_up(max(128, (2 * 1024 * 1024) // per_lane), 128)
    tile = min(tile, 64 * 1024, hw128)

    # VMEM working set: double-buffered inputs + ~6 live (C,tile) f32 temps.
    def need(tl):
        return 2 * (C * tl * x_itemsize + tl * 4) + 6 * C * tl * 4 + 2 * 8 * 128 * 4

    while need(tile) > 24 * 1024 * 1024 and tile > 128:
        tile = max(128, _round_up(tile // 2, 128))

    # v7x megacore: keep >= 8 grid steps on big problems so both TCs get work.
    if HW >= 8192:
        steps = N * ((hw128 + tile - 1) // tile)
        if steps < 8:
            want_tiles = -(-8 // max(1, N))
            tile = max(128, _round_up(-(-hw128 // want_tiles), 128))
    return tile


def focal_loss_pallas(logits_nchw, target_nhw, alpha, *, gamma=2,
                      size_average=True, tile_hw=None):
    """logits_nchw: (N, C, H, W) float; target_nhw: (N, H, W) int; alpha:
       per-class weights (list/array of length C, scalar, or None).
       Returns scalar loss (mean if size_average else sum)."""
    N, C, H, W = logits_nchw.shape
    HW = H * W
    M = N * HW

    # Lane-dense layout straight from NCHW: reshape only (no transpose, no pad).
    x3d = logits_nchw.reshape(N, C, HW)
    t3d = target_nhw.reshape(N, 1, HW).astype(jnp.int32)

    # Mirror the module's alpha handling.
    if alpha is None:
        alpha_arr = jnp.ones((C,), dtype=jnp.float32)
    elif isinstance(alpha, (float, int)):
        assert C == 2, "scalar alpha builds [alpha, 1-alpha]: requires C == 2"
        alpha_arr = jnp.array([alpha, 1.0 - alpha], dtype=jnp.float32)
    else:
        alpha_arr = jnp.asarray(alpha, dtype=jnp.float32)
        assert alpha_arr.shape[0] == C, "alpha must have one weight per class"
    alpha2d = alpha_arr.reshape(C, 1)

    tile = _pick_tile(HW, C, x3d.dtype.itemsize, N, tile_hw)
    num_tiles = pl.cdiv(HW, tile)

    kernel = functools.partial(_focal_loss_kernel, gamma=gamma, hw_true=HW,
                               tile_hw=tile, num_classes=C)

    bytes_accessed = (N * C * HW * x3d.dtype.itemsize   # logits read
                      + N * HW * 4                      # targets read
                      + N * num_tiles * 8 * 128 * 4     # partial-sum write
                      + C * 4)                          # alpha
    cost = pl.CostEstimate(flops=12 * N * C * HW,
                           transcendentals=N * HW * (C + 2),
                           bytes_accessed=bytes_accessed)

    vmem_need = (2 * (C * tile * x3d.dtype.itemsize + tile * 4)
                 + 6 * C * tile * 4 + 2 * 8 * 128 * 4)
    vmem_limit = int(min(48 * 1024 * 1024,
                         max(32 * 1024 * 1024, 2 * vmem_need)))

    partials = pl.pallas_call(
        kernel,
        out_shape=jax.ShapeDtypeStruct((N, num_tiles, 8, 128), jnp.float32),
        grid_spec=pltpu.PrefetchScalarGridSpec(
            num_scalar_prefetch=0,
            grid=(N, num_tiles),
            in_specs=[
                pl.BlockSpec((None, C, tile), lambda n, t: (n, 0, t)),
                pl.BlockSpec((None, 1, tile), lambda n, t: (n, 0, t)),
                pl.BlockSpec((C, 1), lambda n, t: (0, 0)),
            ],
            out_specs=pl.BlockSpec((None, None, 8, 128),
                                   lambda n, t: (n, t, 0, 0)),
        ),
        compiler_params=pltpu.CompilerParams(
            dimension_semantics=("parallel", "parallel"),
            vmem_limit_bytes=vmem_limit),
        cost_estimate=cost,
    )(x3d, t3d, alpha2d)

    total = jnp.sum(partials)          # tiny: N * num_tiles * 4 KiB read-back
    return total / jnp.float32(M) if size_average else total


def focal_loss_ref(logits_nchw, target_nhw, alpha, *, gamma=2,
                   size_average=True):
    N, C, H, W = logits_nchw.shape
    x2d = jnp.transpose(logits_nchw.reshape(N, C, H * W), (0, 2, 1)).reshape(-1, C)
    t = target_nhw.reshape(-1).astype(jnp.int32)
    logp = jax.nn.log_softmax(x2d.astype(jnp.float32), axis=1)
    logpt = jnp.take_along_axis(logp, t[:, None], axis=1)[:, 0]
    pt = jnp.exp(logpt)
    at = jnp.asarray(alpha, dtype=jnp.float32)[t]
    logpt = logpt * at
    loss = -1.0 * (1.0 - pt) ** gamma * logpt
    return loss.mean() if size_average else loss.sum()


if __name__ == "__main__":
    key = jax.random.PRNGKey(0)
    N, C, H, W = 2, 4, 16, 16
    kx, kt = jax.random.split(key)
    logits = jax.random.normal(kx, (N, C, H, W), dtype=jnp.float32)
    target = jax.random.randint(kt, (N, H, W), 0, C, dtype=jnp.int32)
    # Deterministic per-class alpha weights (module's list-alpha branch).
    alpha = [0.1, 0.2, 0.3, 0.4]

    loss = focal_loss_pallas(logits, target, alpha, gamma=2, size_average=True)
    jax.block_until_ready(loss)

    ref = focal_loss_ref(logits, target, jnp.array(alpha, dtype=jnp.float32),
                         gamma=2, size_average=True)
    assert jnp.allclose(loss, ref, rtol=1e-5, atol=1e-6), (loss, ref)
    print("KERNEL_OK")
</pallas_src>

<mosaic_0001>
module attributes {stable_mosaic.version = 11 : i64} {
  func.func @_focal_loss_kernel(%arg0: i32, %arg1: i32, %arg2: memref<1x4x256xf32, #tpu.memory_space<vmem>>, %arg3: memref<1x1x256xi32, #tpu.memory_space<vmem>>, %arg4: memref<4x1xf32, #tpu.memory_space<vmem>>, %arg5: memref<1x1x8x128xf32, #tpu.memory_space<vmem>>) attributes {dimension_semantics = [#tpu.dimension_semantics<parallel>, #tpu.dimension_semantics<parallel>], iteration_bounds = array<i64: 2, 1>, scalar_prefetch = 0 : i64, scratch_operands = 0 : i64, tpu.core_type = #tpu.core_type<tc>, window_params = [{transform_indices = @transform_0, window_bounds = array<i64: 1, 4, 256>}, {transform_indices = @transform_1, window_bounds = array<i64: 1, 1, 256>}, {pipeline_mode = #tpu.pipeline_mode<synchronous>, transform_indices = @transform_2, window_bounds = array<i64: 4, 1>}, {transform_indices = @transform_3, window_bounds = array<i64: 1, 1, 8, 128>}]} {
    %c0 = arith.constant 0 : index
    %c0_0 = arith.constant 0 : index
    %c0_1 = arith.constant 0 : index
    %0 = vector.load %arg2[%c0, %c0_0, %c0_1] : memref<1x4x256xf32, #tpu.memory_space<vmem>>, vector<1x4x256xf32>
    %1 = vector.shape_cast %0 : vector<1x4x256xf32> to vector<4x256xf32>
    %c0_2 = arith.constant 0 : index
    %c0_3 = arith.constant 0 : index
    %c0_4 = arith.constant 0 : index
    %2 = vector.load %arg3[%c0_2, %c0_3, %c0_4] : memref<1x1x256xi32, #tpu.memory_space<vmem>>, vector<1x1x256xi32>
    %3 = vector.shape_cast %2 : vector<1x1x256xi32> to vector<1x256xi32>
    %4 = tpu.iota {dimensions = array<i32: 0>} : vector<4x1xi32>
    %5 = vector.broadcast %4 : vector<4x1xi32> to vector<4x256xi32>
    %6 = vector.broadcast %3 : vector<1x256xi32> to vector<4x256xi32>
    %7 = arith.cmpi eq, %5, %6 : vector<4x256xi32>
    %8 = arith.extui %7 : vector<4x256xi1> to vector<4x256xi32>
    %9 = arith.sitofp %8 : vector<4x256xi32> to vector<4x256xf32>
    %cst = arith.constant dense<0xFF800000> : vector<256xf32>
    %10 = vector.multi_reduction <maximumf>, %1, %cst [0] : vector<4x256xf32> to vector<256xf32>
    %11 = vector.shape_cast %10 : vector<256xf32> to vector<1x256xf32>
    %12 = vector.broadcast %11 : vector<1x256xf32> to vector<4x256xf32>
    %13 = arith.subf %1, %12 : vector<4x256xf32>
    %14 = math.exp %13 : vector<4x256xf32>
    %cst_5 = arith.constant dense<0.000000e+00> : vector<256xf32>
    %15 = vector.multi_reduction <add>, %14, %cst_5 [0] : vector<4x256xf32> to vector<256xf32>
    %16 = vector.shape_cast %15 : vector<256xf32> to vector<1x256xf32>
    %17 = arith.mulf %13, %9 : vector<4x256xf32>
    %cst_6 = arith.constant dense<0.000000e+00> : vector<256xf32>
    %18 = vector.multi_reduction <add>, %17, %cst_6 [0] : vector<4x256xf32> to vector<256xf32>
    %19 = vector.shape_cast %18 : vector<256xf32> to vector<1x256xf32>
    %20 = math.log %16 : vector<1x256xf32>
    %21 = arith.subf %19, %20 : vector<1x256xf32>
    %22 = math.exp %21 : vector<1x256xf32>
    %c0_7 = arith.constant 0 : index
    %c0_8 = arith.constant 0 : index
    %23 = vector.load %arg4[%c0_7, %c0_8] : memref<4x1xf32, #tpu.memory_space<vmem>>, vector<4x1xf32>
    %24 = vector.broadcast %23 : vector<4x1xf32> to vector<4x256xf32>
    %25 = arith.mulf %24, %9 : vector<4x256xf32>
    %cst_9 = arith.constant dense<0.000000e+00> : vector<256xf32>
    %26 = vector.multi_reduction <add>, %25, %cst_9 [0] : vector<4x256xf32> to vector<256xf32>
    %27 = vector.shape_cast %26 : vector<256xf32> to vector<1x256xf32>
    %cst_10 = arith.constant 1.000000e+00 : f32
    %28 = vector.broadcast %cst_10 : f32 to vector<1x256xf32>
    %29 = arith.subf %28, %22 : vector<1x256xf32>
    %30 = arith.mulf %29, %29 : vector<1x256xf32>
    %cst_11 = arith.constant 0.000000e+00 : f32
    %31 = vector.broadcast %cst_11 : f32 to vector<1x256xf32>
    %32 = arith.subf %31, %30 : vector<1x256xf32>
    %33 = arith.mulf %21, %27 : vector<1x256xf32>
    %34 = arith.mulf %32, %33 : vector<1x256xf32>
    %35 = vector.shape_cast %34 : vector<1x256xf32> to vector<1x1x256xf32>
    %cst_12 = arith.constant dense<0.000000e+00> : vector<1xf32>
    %36 = vector.multi_reduction <add>, %35, %cst_12 [1, 2] : vector<1x1x256xf32> to vector<1xf32>
    %37 = vector.shape_cast %36 : vector<1xf32> to vector<1x1x1xf32>
    %38 = vector.extract %37[0, 0, 0] : f32 from vector<1x1x1xf32>
    %39 = tpu.iota {dimensions = array<i32: 0>} : vector<8x128xi32>
    %40 = tpu.iota {dimensions = array<i32: 1>} : vector<8x128xi32>
    %c0_i32 = arith.constant 0 : i32
    %41 = vector.broadcast %c0_i32 : i32 to vector<8x128xi32>
    %42 = arith.cmpi eq, %39, %41 : vector<8x128xi32>
    %c0_i32_13 = arith.constant 0 : i32
    %43 = vector.broadcast %c0_i32_13 : i32 to vector<8x128xi32>
    %44 = arith.cmpi eq, %40, %43 : vector<8x128xi32>
    %45 = arith.andi %42, %44 : vector<8x128xi1>
    %cst_14 = arith.constant 0.000000e+00 : f32
    %46 = vector.broadcast %38 : f32 to vector<8x128xf32>
    %47 = vector.broadcast %cst_14 : f32 to vector<8x128xf32>
    %48 = arith.select %45, %46, %47 : vector<8x128xi1>, vector<8x128xf32>
    %c0_15 = arith.constant 0 : index
    %c0_16 = arith.constant 0 : index
    %c0_17 = arith.constant 0 : index
    %c0_18 = arith.constant 0 : index
    %49 = vector.load %arg5[%c0_15, %c0_16, %c0_17, %c0_18] : memref<1x1x8x128xf32, #tpu.memory_space<vmem>>, vector<1x1x8x128xf32>
    %50 = vector.shape_cast %49 : vector<1x1x8x128xf32> to vector<8x128xf32>
    %51 = vector.shape_cast %48 : vector<8x128xf32> to vector<1x1x8x128xf32>
    tpu.vector_store %arg5[%c0_15, %c0_16, %c0_17, %c0_18], %51 {strides = array<i32>} : memref<1x1x8x128xf32, #tpu.memory_space<vmem>>, vector<1x1x8x128xf32>,
    return
  }
  func.func @transform_0(%arg0: i32, %arg1: i32) -> (i32, i32, i32) {
    %c0_i32 = arith.constant 0 : i32
    %c0_i32_0 = arith.constant 0 : i32
    return %arg0, %c0_i32, %arg1 : i32, i32, i32
  }
  func.func @transform_1(%arg0: i32, %arg1: i32) -> (i32, i32, i32) {
    %c0_i32 = arith.constant 0 : i32
    %c0_i32_0 = arith.constant 0 : i32
    return %arg0, %c0_i32, %arg1 : i32, i32, i32
  }
  func.func @transform_2(%arg0: i32, %arg1: i32) -> (i32, i32) {
    %c0_i32 = arith.constant 0 : i32
    %c0_i32_0 = arith.constant 0 : i32
    %c0_i32_1 = arith.constant 0 : i32
    return %c0_i32, %c0_i32_0 : i32, i32
  }
  func.func @transform_3(%arg0: i32, %arg1: i32) -> (i32, i32, i32, i32) {
    %c0_i32 = arith.constant 0 : i32
    %c0_i32_0 = arith.constant 0 : i32
    %c0_i32_1 = arith.constant 0 : i32
    return %arg0, %arg1, %c0_i32, %c0_i32_0 : i32, i32, i32, i32
  }
}

</mosaic_0001>

<llo_original>
// kernel: tpu_custom_call.1
$region0: #{tpu_custom_call.1}
  #allocation0 [shape = 'u32[]', space=smem, size = 0x4, offset = 0x4, fixed_abs, tag = 'smem constant byte address 0x4 - core index']
  #allocation1 [shape = 'u32[144,128]{1,0:T(1,128)}', space=vmem, size = 0x12000, scoped, tag = 'internal scratch']
  %s0 = inlined_call_operand.hbm [shape: f32[2,4,256], index: 0, kind: input, shape index: {}]
  %s1 = inlined_call_operand.vmem [shape: s32[2,1,256], index: 1, kind: input, shape index: {}]
  %s2 = inlined_call_operand.vmem [shape: f32[4,1], index: 2, kind: input, shape index: {}]
  %s3 = inlined_call_operand.hbm [shape: f32[2,1,8,128], index: 3, kind: output, shape index: {}]
  %s4 = sld [smem:[#allocation0]]
  $region49: #{tpu_custom_call.1} parent=0
    _
  %s6 = ssub.s32 1, %s4
  %s7 = scalar_select 0, %s6, %s4
  $region1: #{tpu_custom_call.1} parent=0
    #allocation2 [shape = 'u8[8192]{0}', space=vmem, size = 0x2000, scoped, tag = 'input window, operand 0']
    #allocation3 [shape = 's32[2]{0}', space=sflag, size = 0x8, scoped, tag = 'scoped memory for tpu_custom_call.1']
    #allocation4 [shape = 's32[2]{0}', space=sflag, size = 0x8, scoped, tag = 'scoped memory for tpu_custom_call.1']
    #allocation5 [shape = 'u8[8192]{0}', space=vmem, size = 0x2000, scoped, tag = 'output window, operand 0']
    %8 = vsyncpa [#allocation3], 0
    %s9 = scalar_lea.sflag [#allocation3], 1
    %10 = vsyncpa %s9, 0
    %11 = vsyncpa [#allocation4], 0
    %s12 = scalar_lea.sflag [#allocation4], 1
    %13 = vsyncpa %s12, 0
    loop: start=0, step=1, limit=4
    $region2: #{tpu_custom_call.1} parent=1 // loop_pre_header
      _
    $region3: #{tpu_custom_call.1} parent=1 // loop_header
      %s15 = sphi 0, %s19
      %p16 = scmp.ge.s32.totalorder %s15, 4
      %s22 = sphi 0, %s34
      %s23 = sphi 0, %s30
      %s24 = sphi 0, %s22
      %s25 = sphi 0, %s23
      %s26 = sphi 0, %s24
      %s27 = sphi 0, %s25
      %s39 = sphi 0, %s41
      %s42 = sphi 0, %s39
      %s43 = sphi 0, %s42
      %s59 = sphi 0, %s43
      %s67 = sphi 0, %s69
      %s70 = sphi 0, %s67
      %s71 = sphi 0, %s70
      %s87 = sphi 0, %s71
      %s91 = sphi 0, %s91
      %s93 = sphi 0, %s91
      %s94 = sphi 0, %s93
      %s108 = sphi 0, %s94
      %s116 = sphi 0, %s118
      %s119 = sphi 0, %s116
      %s120 = sphi 0, %s119
      %s136 = sphi 0, %s120
    $region4: #{tpu_custom_call.1} parent=1 // loop_header_branch
      %18 = sbr.rel (%p16) target = $region8
    $region5: #{tpu_custom_call.1} parent=1 // loop_body
      %s20 = ssub.s32 %s15, 1
      %s21 = ssub.s32 %s15, 2
      %s28 = sadd.s32 1, %s23
      %p29 = scmp.ge.s32.totalorder %s28, 1
      %s30 = scalar_select %p29, 0, %s28
      %s31 = sadd.s32 1, %s22
      %s32 = scalar_select %p29, %s31, %s22
      %p33 = scmp.ge.s32.totalorder %s32, 2
      %s34 = scalar_select %p33, 0, %s32
      %s35 = ssub.s32 %s22, %s34
      %s36 = ssub.s32 %s23, %s30
      %s37 = sor.u32 %s35, %s36
      %p38 = scmp.eq.s32.totalorder %s37, 0
      %s40 = sadd.s32 %s39, 1
      %s41 = scalar_select %p38, %s39, %s40
      %p44 = pneg %p38
      %p45 = scmp.eq.s32.totalorder %s15, 1
      %p46 = por %p44, %p45
      %p47 = scmp.ne.s32.totalorder %s39, %s42
      %p48 = scmp.eq.s32.totalorder %s15, 0
      %p49 = por %p47, %p48
      %p50 = scmp.ne.s32.totalorder %s39, %s42
      %p51 = scmp.eq.s32.totalorder %s20, 1
      %p52 = por %p50, %p51
      %p53 = scmp.ne.s32.totalorder %s42, %s43
      %p54 = scmp.eq.s32.totalorder %s20, 0
      %p55 = por %p53, %p54
      %p56 = scmp.ne.s32.totalorder %s42, %s43
      %p57 = scmp.eq.s32.totalorder %s21, 1
      %p58 = por %p56, %p57
      %p60 = scmp.ne.s32.totalorder %s43, %s59
      %p61 = scmp.eq.s32.totalorder %s21, 0
      %p62 = por %p60, %p61
      %s63 = ssub.s32 %s22, %s34
      %s64 = ssub.s32 %s23, %s30
      %s65 = sor.u32 %s63, %s64
      %p66 = scmp.eq.s32.totalorder %s65, 0
      %s68 = sadd.s32 %s67, 1
      %s69 = scalar_select %p66, %s67, %s68
      %p72 = pneg %p66
      %p73 = scmp.eq.s32.totalorder %s15, 1
      %p74 = por %p72, %p73
      %p75 = scmp.ne.s32.totalorder %s67, %s70
      %p76 = scmp.eq.s32.totalorder %s15, 0
      %p77 = por %p75, %p76
      %p78 = scmp.ne.s32.totalorder %s67, %s70
      %p79 = scmp.eq.s32.totalorder %s20, 1
      %p80 = por %p78, %p79
      %p81 = scmp.ne.s32.totalorder %s70, %s71
      %p82 = scmp.eq.s32.totalorder %s20, 0
      %p83 = por %p81, %p82
      %p84 = scmp.ne.s32.totalorder %s70, %s71
      %p85 = scmp.eq.s32.totalorder %s21, 1
      %p86 = por %p84, %p85
      %p88 = scmp.ne.s32.totalorder %s71, %s87
      %p89 = scmp.eq.s32.totalorder %s21, 0
      %p90 = por %p88, %p89
      %s92 = sadd.s32 %s91, 1
      %p95 = scmp.eq.s32.totalorder %s15, 1
      %p96 = scmp.ne.s32.totalorder %s91, %s93
      %p97 = scmp.eq.s32.totalorder %s15, 0
      %p98 = por %p96, %p97
      %p99 = scmp.ne.s32.totalorder %s91, %s93
      %p100 = scmp.eq.s32.totalorder %s20, 1
      %p101 = por %p99, %p100
      %p102 = scmp.ne.s32.totalorder %s93, %s94
      %p103 = scmp.eq.s32.totalorder %s20, 0
      %p104 = por %p102, %p103
      %p105 = scmp.ne.s32.totalorder %s93, %s94
      %p106 = scmp.eq.s32.totalorder %s21, 1
      %p107 = por %p105, %p106
      %p109 = scmp.ne.s32.totalorder %s94, %s108
      %p110 = scmp.eq.s32.totalorder %s21, 0
      %p111 = por %p109, %p110
      %s112 = ssub.s32 %s22, %s34
      %s113 = ssub.s32 %s23, %s30
      %s114 = sor.u32 %s112, %s113
      %p115 = scmp.eq.s32.totalorder %s114, 0
      %s117 = sadd.s32 %s116, 1
      %s118 = scalar_select %p115, %s116, %s117
      %p121 = pneg %p115
      %p122 = scmp.eq.s32.totalorder %s15, 1
      %p123 = por %p121, %p122
      %p124 = scmp.ne.s32.totalorder %s116, %s119
      %p125 = scmp.eq.s32.totalorder %s15, 0
      %p126 = por %p124, %p125
      %p127 = scmp.ne.s32.totalorder %s116, %s119
      %p128 = scmp.eq.s32.totalorder %s20, 1
      %p129 = por %p127, %p128
      %p130 = scmp.ne.s32.totalorder %s119, %s120
      %p131 = scmp.eq.s32.totalorder %s20, 0
      %p132 = por %p130, %p131
      %p133 = scmp.ne.s32.totalorder %s119, %s120
      %p134 = scmp.eq.s32.totalorder %s21, 1
      %p135 = por %p133, %p134
      %p137 = scmp.ne.s32.totalorder %s120, %s136
      %p138 = scmp.eq.s32.totalorder %s21, 0
      %p139 = por %p137, %p138
      %p140 = scmp.le.s32.totalorder 1, %s15
      %p141 = scmp.lt.s32.totalorder %s15, 3
      %p142 = pnand %p140, %p141
      %p143 = pneg %p142
      // Predicated region
      $region9: #{tpu_custom_call.1} parent=5 // pred_check
        _
      $region10: #{tpu_custom_call.1} parent=5 // pred_check_branch
        %145 = sbr.rel (%p142) target = $region12
      $region11: #{tpu_custom_call.1} parent=5 // pred_region
        %s146 = ssub.s32 %s15, 1
        // Predicated region
        $region13: #{tpu_custom_call.1} parent=11 // pred_check
          %p147 = pneg %p104
        $region14: #{tpu_custom_call.1} parent=11 // pred_check_branch
          %149 = sbr.rel (%p147) target = $region16
        $region15: #{tpu_custom_call.1} parent=11 // pred_region
          _
        $region16: #{tpu_custom_call.1} parent=11 // pred_fallthru
          _
      $region12: #{tpu_custom_call.1} parent=5 // pred_fallthru
        _
      %p150 = scmp.lt.s32.totalorder %s15, 2
      // Predicated region
      $region17: #{tpu_custom_call.1} parent=5 // pred_check
        %p151 = pneg %p150
      $region18: #{tpu_custom_call.1} parent=5 // pred_check_branch
        %153 = sbr.rel (%p151) target = $region20
      $region19: #{tpu_custom_call.1} parent=5 // pred_region
        // Predicated region
        $region21: #{tpu_custom_call.1} parent=19 // pred_check
          %p154 = pneg %p49
        $region22: #{tpu_custom_call.1} parent=19 // pred_check_branch
          %156 = sbr.rel (%p154) target = $region24
        $region23: #{tpu_custom_call.1} parent=19 // pred_region
          %s157 = sand.u32 %s39, 1
          %s158 = scalar_lea.sflag [#allocation3], %s157
          %s159 = sand.u32 %s39, 1
          %s160 = smul.addr %s159, 8
          %s161 = scalar_lea.vmem [#allocation2], %s160
          %s162 = smul.u32 2, %s23
          %s164 = ssub.s32 128, 128
          %165 = vsyncadd %s158, %s164
          %s166 = smul.addr %s22, 2
          %s167 = sadd.s32 %s162, %s166
          %s168 = smul.addr %s167, 64
          %s169 = scalar_lea.hbm %s0, %s168
          %s171 = sshll.u32 %s161, 4
          %s172 = int_to_ptr.vmem [resolvable:$true] %s171
          %174 = dma.hbm_to_vmem [thread:$0]  %s169, 128, %s172, %s158
        $region24: #{tpu_custom_call.1} parent=19 // pred_fallthru
          _
        // Predicated region
        $region25: #{tpu_custom_call.1} parent=19 // pred_check
          %p175 = pneg %p77
        $region26: #{tpu_custom_call.1} parent=19 // pred_check_branch
          %177 = sbr.rel (%p175) target = $region28
        $region27: #{tpu_custom_call.1} parent=19 // pred_region
          %s178 = smul.u32 2, %s23
          %p179 = scmp.lt.s32.totalorder %s22, 1
          %s180 = scalar_select %p179, %s22, 1
          %p181 = scmp.lt.s32.totalorder %s178, 1
          %s182 = scalar_select %p181, %s178, 1
          %s183 = smul.addr %s180, 2
          %s184 = sadd.s32 %s182, %s183
          %s185 = scalar_lea.vmem %s1, %s184
          %s186 = smul.u32 2, %s23
        $region28: #{tpu_custom_call.1} parent=19 // pred_fallthru
          _
      $region20: #{tpu_custom_call.1} parent=5 // pred_fallthru
        _
      %p187 = scmp.le.s32.totalorder 1, %s15
      %p188 = scmp.lt.s32.totalorder %s15, 3
      %p189 = pnand %p187, %p188
      %p190 = pneg %p189
      // Predicated region
      $region29: #{tpu_custom_call.1} parent=5 // pred_check
        _
      $region30: #{tpu_custom_call.1} parent=5 // pred_check_branch
        %192 = sbr.rel (%p189) target = $region32
      $region31: #{tpu_custom_call.1} parent=5 // pred_region
        %s193 = ssub.s32 %s15, 1
        %s194 = sand.u32 %s42, 1
        %s195 = scalar_lea.sflag [#allocation3], %s194
        %s196 = sand.u32 %s42, 1
        %s197 = smul.addr %s196, 8
        %s198 = scalar_lea.vmem [#allocation2], %s197
        // Predicated region
        $region33: #{tpu_custom_call.1} parent=31 // pred_check
          %p199 = pneg %p55
        $region34: #{tpu_custom_call.1} parent=31 // pred_check_branch
          %201 = sbr.rel (%p199) target = $region36
        $region35: #{tpu_custom_call.1} parent=31 // pred_region
          %202 = dma.done %s195, 128
        $region36: #{tpu_custom_call.1} parent=31 // pred_fallthru
          _
        %s203 = sand.u32 %s42, 1
        %s204 = scalar_lea.sflag [#allocation3], %s203
        %s205 = sand.u32 %s42, 1
        %s206 = smul.addr %s205, 8
        %s207 = scalar_lea.vmem [#allocation2], %s206
        %p208 = pneg %p55
        %p209 = pneg %p52
        %s210 = smul.u32 2, %s25
        %p211 = scmp.lt.s32.totalorder %s24, 1
        %s212 = scalar_select %p211, %s24, 1
        %p213 = scmp.lt.s32.totalorder %s210, 1
        %s214 = scalar_select %p213, %s210, 1
        %s215 = smul.addr %s212, 2
        %s216 = sadd.s32 %s214, %s215
        %s217 = scalar_lea.vmem %s1, %s216
        %p218 = pneg %p83
        %p219 = pneg %p80
        %p220 = pneg %p104
        %p221 = pneg %p101
        %p222 = pneg %p132
        %p223 = pneg %p129
        %s224 = sand.u32 %s119, 1
        %s225 = scalar_lea.sflag [#allocation4], %s224
        %s226 = sand.u32 %s119, 1
        %s227 = smul.addr %s226, 8
        %s228 = scalar_lea.vmem [#allocation5], %s227
        %s229 = smul.u32 2, %s25
        %s230 = smul.u32 2, %s25
        %p231 = scmp.lt.s32.totalorder %s24, 1
        %s232 = scalar_select %p231, %s24, 1
        %p233 = scmp.lt.s32.totalorder %s230, 1
        %s234 = scalar_select %p233, %s230, 1
        %s235 = smul.addr %s232, 2
        %s236 = sadd.s32 %s234, %s235
        %s237 = scalar_lea.vmem %s1, %s236
        %s238 = smul.u32 2, %s25
        %v239 = vld [vmem:[%s198] sm:$0xff]
        %v240 = vld [vmem:[%s237] sm:$0x3]
        %v241 = vlaneseq
        %v242 = vshrl.u32 %v241, 7
        %v243 = vlaneseq
        %v244 = vshrl.u32 %v243, 7
        %v245 = vsub.s32 0, %v244
        %v246 = vrot.slane %v240, %v245
        %v247 = vlaneseq
        %v248 = vshrl.u32 %v247, 7
        %v249 = vsub.s32 1, %v248
        %v250 = vrot.slane %v240, %v249
        %vm251 = vcmp.eq.s32.totalorder %v242, %v246
        %vm252 = vcmp.eq.s32.totalorder %v242, %v250
        %v253 = vsel %vm251, 1, 0
        %v254 = vsel %vm252, 1, 0
        %v255 = vcvt.s32.f32 %v253
        %v256 = vcvt.s32.f32 %v254
        %v258 = vcombine.high %v239, %v239
        %vm260 = vcmask 1043456
        %v261 = vsel %vm260, %v239, -inf
        %v262 = vrot.slane %v261, 4
        %v263 = vmax.f32 %v261, %v262
        %v264 = vrot.slane %v263, 2
        %v265 = vmax.f32 %v263, %v264
        %v266 = vrot.slane %v265, 1
        %v267 = vmax.f32 %v265, %v266
        %v268 = vsel %vm260, %v258, -inf
        %v269 = vrot.slane %v268, 4
        %v270 = vmax.f32 %v268, %v269
        %v271 = vrot.slane %v270, 2
        %v272 = vmax.f32 %v270, %v271
        %v273 = vrot.slane %v272, 1
        %v274 = vmax.f32 %v272, %v273
        %v277 = vcombine.low %v267, %v274
        %v279 = vsub.f32 %v239, %v277
        %v280 = vmul.f32 %v279, 1.442695
        %v281 = vpow.pop %v280
        %v283 = vcombine.high %v281, %v281
        %v285 = vsel %vm260, %v281, 0.0
        %v286 = vrot.slane %v285, 4
        %v287 = vadd.f32 %v285, %v286
        %v288 = vrot.slane %v287, 2
        %v289 = vadd.f32 %v287, %v288
        %v290 = vrot.slane %v289, 1
        %v291 = vadd.f32 %v289, %v290
        %v292 = vsel %vm260, %v283, 0.0
        %v293 = vrot.slane %v292, 4
        %v294 = vadd.f32 %v292, %v293
        %v295 = vrot.slane %v294, 2
        %v296 = vadd.f32 %v294, %v295
        %v297 = vrot.slane %v296, 1
        %v298 = vadd.f32 %v296, %v297
        %v301 = vcombine.low %v255, %v256
        %v303 = vmul.f32 %v279, %v301
        %v305 = vcombine.high %v303, %v303
        %v307 = vsel %vm260, %v303, 0.0
        %v308 = vrot.slane %v307, 4
        %v309 = vadd.f32 %v307, %v308
        %v310 = vrot.slane %v309, 2
        %v311 = vadd.f32 %v309, %v310
        %v312 = vrot.slane %v311, 1
        %v313 = vadd.f32 %v311, %v312
        %v314 = vsel %vm260, %v305, 0.0
        %v315 = vrot.slane %v314, 4
        %v316 = vadd.f32 %v314, %v315
        %v317 = vrot.slane %v316, 2
        %v318 = vadd.f32 %v316, %v317
        %v319 = vrot.slane %v318, 1
        %v320 = vadd.f32 %v318, %v319
        %v321 = vlog2.pop %v291
        %v322 = vmul.f32 %v321, 0.6931472
        %v323 = vlog2.pop %v298
        %v324 = vmul.f32 %v323, 0.6931472
        %v325 = vsub.f32 %v313, %v322
        %v326 = vsub.f32 %v320, %v324
        %v327 = vmul.f32 %v325, 1.442695
        %v328 = vpow.pop %v327
        %v329 = vmul.f32 %v326, 1.442695
        %v330 = vpow.pop %v329
        %v331 = vld [vmem:[%s2] sm:$0xf]
        %333 = vset.pattern.permute.xlu0 0
        %334 = vperm.xlu0 %333, %v331
        %v335 = vpop.permute.xlu0 %334
        %v337 = vmul.f32 %v335, %v255
        %v338 = vmul.f32 %v335, %v256
        %v339 = vsel %vm260, %v337, 0.0
        %v340 = vrot.slane %v339, 4
        %v341 = vadd.f32 %v339, %v340
        %v342 = vrot.slane %v341, 2
        %v343 = vadd.f32 %v341, %v342
        %v344 = vrot.slane %v343, 1
        %v345 = vadd.f32 %v343, %v344
        %v346 = vsel %vm260, %v338, 0.0
        %v347 = vrot.slane %v346, 4
        %v348 = vadd.f32 %v346, %v347
        %v349 = vrot.slane %v348, 2
        %v350 = vadd.f32 %v348, %v349
        %v351 = vrot.slane %v350, 1
        %v352 = vadd.f32 %v350, %v351
        %v353 = vsub.f32 1.0, %v328
        %v354 = vsub.f32 1.0, %v330
        %v355 = vmul.f32 %v353, %v353
        %v356 = vmul.f32 %v354, %v354
        %v357 = vsub.f32 0.0, %v355
        %v358 = vsub.f32 0.0, %v356
        %v359 = vmul.f32 %v325, %v345
        %v360 = vmul.f32 %v326, %v352
        %v361 = vmul.f32 %v357, %v359
        %v362 = vmul.f32 %v358, %v360
        %vm363 = vcmask 1040384
        %v364 = vsel %vm363, %v361, 0.0
        %v365 = vsel %vm363, %v362, 0.0
        %v366 = vadd.f32 %v364, %v365
        %367 = vadd.xlane.f32.xlu0 %v366
        %v368 = vpop.xlane.xlu0 %367
        %v369 = vrot.slane %v368, 4
        %v370 = vadd.f32 %v368, %v369
        %v371 = vrot.slane %v370, 2
        %v372 = vadd.f32 %v370, %v371
        %v373 = vrot.slane %v372, 1
        %v374 = vadd.f32 %v372, %v373
        %s375 = vtos %v374
        %v376 = vlaneseq
        %v377 = vand.u32 %v376, 127
        %vm378 = vcmp.eq.s32.totalorder %v242, 0
        %vm379 = vcmp.eq.s32.totalorder %v377, 0
        %vm380 = vmand %vm378, %vm379
        %v381 = vstv %s375
        %v382 = vsel %vm380, %v381, 0.0
        %383 = vst [vmem:[%s228] sm:$0xff] %v382
        %s384 = sand.u32 %s119, 1
        %s385 = scalar_lea.sflag [#allocation4], %s384
        %s386 = sand.u32 %s119, 1
        %s387 = smul.addr %s386, 8
        %s388 = scalar_lea.vmem [#allocation5], %s387
        // Predicated region
        $region37: #{tpu_custom_call.1} parent=31 // pred_check
          %p389 = pneg %p129
        $region38: #{tpu_custom_call.1} parent=31 // pred_check_branch
          %391 = sbr.rel (%p389) target = $region40
        $region39: #{tpu_custom_call.1} parent=31 // pred_region
          %s393 = ssub.s32 128, 128
          %394 = vsyncadd %s385, %s393
          %s395 = sadd.s32 %s25, %s24
          %s396 = smul.addr %s395, 128
          %s397 = scalar_lea.hbm %s3, %s396
          %s399 = sshll.u32 %s388, 4
          %s400 = int_to_ptr.vmem [resolvable:$true] %s399
          %402 = dma.vmem_to_hbm [thread:$0]  %s400, 128, %s397, %s385
        $region40: #{tpu_custom_call.1} parent=31 // pred_fallthru
          _
      $region32: #{tpu_custom_call.1} parent=5 // pred_fallthru
        _
      %p403 = scmp.le.s32.totalorder 2, %s15
      // Predicated region
      $region41: #{tpu_custom_call.1} parent=5 // pred_check
        %p404 = pneg %p403
      $region42: #{tpu_custom_call.1} parent=5 // pred_check_branch
        %406 = sbr.rel (%p404) target = $region44
      $region43: #{tpu_custom_call.1} parent=5 // pred_region
        %s407 = ssub.s32 %s15, 2
        // Predicated region
        $region45: #{tpu_custom_call.1} parent=43 // pred_check
          %p408 = pneg %p135
        $region46: #{tpu_custom_call.1} parent=43 // pred_check_branch
          %410 = sbr.rel (%p408) target = $region48
        $region47: #{tpu_custom_call.1} parent=43 // pred_region
          %s411 = sand.u32 %s120, 1
          %s412 = scalar_lea.sflag [#allocation4], %s411
          %s413 = sand.u32 %s120, 1
          %s414 = smul.addr %s413, 8
          %s415 = scalar_lea.vmem [#allocation5], %s414
          %416 = dma.done %s412, 128
        $region48: #{tpu_custom_call.1} parent=43 // pred_fallthru
          _
      $region44: #{tpu_custom_call.1} parent=5 // pred_fallthru
        _
    $region6: #{tpu_custom_call.1} parent=1 // loop_footer
      %s19 = sadd.s32 1, %s15
    $region7: #{tpu_custom_call.1} parent=1 // loop_footer_branch
      %14 = sbr.rel target = $region3
    $region8: #{tpu_custom_call.1} parent=1 // loop_exit
      _
    %417 = vsyncpa [#allocation3], 1
    %s418 = scalar_lea.sflag [#allocation3], 1
    %419 = vsyncpa %s418, 1
    %420 = vsyncpa [#allocation4], 1
    %s421 = scalar_lea.sflag [#allocation4], 1
    %422 = vsyncpa %s421, 1

</llo_original>
